<compile_context>
chip_gen: v7x
topology: tpu7x:2x2x1
jax: 0.10.0
libtpu: 0.0.40
codegen_flags: <defaults>
</compile_context>

<pallas_src>
import jax
import jax.numpy as jnp
from jax import lax
from jax.experimental import pallas as pl
from jax.experimental.pallas import tpu as pltpu


def _rup(x, m):
    return ((x + m - 1) // m) * m


# ----------------------------------------------------------------------------
# Kernels
# ----------------------------------------------------------------------------
def _mm_bias_kernel(a_ref, w_ref, b_ref, o_ref):
    # Whole-K contraction: bf16 x bf16 -> f32 on the MXU, bias fused, written
    # straight to the (f32) output block.  No scratch, no init/finalize.
    o_ref[...] = (jnp.dot(a_ref[...], w_ref[...],
                          preferred_element_type=jnp.float32)
                  + b_ref[...]).astype(o_ref.dtype)


def _mm_bias_acc_kernel(a_ref, w_ref, b_ref, o_ref, acc_ref):
    # Fallback when 16*Cin is too large for a single VMEM-resident K tile.
    k = pl.program_id(2)

    @pl.when(k == 0)
    def _():
        acc_ref[...] = jnp.zeros_like(acc_ref)

    acc_ref[...] += jnp.dot(a_ref[...], w_ref[...],
                            preferred_element_type=jnp.float32)

    @pl.when(k == pl.num_programs(2) - 1)
    def _():
        o_ref[...] = (acc_ref[...] + b_ref[...]).astype(o_ref.dtype)


# ----------------------------------------------------------------------------
# out[M, N] = a[M, K] @ w[K, N] + bias[1, N]     (a, w bf16; f32 accumulation)
# ----------------------------------------------------------------------------
def _matmul_bias(a, w, bias, out_dtype=jnp.float32):
    M, K = a.shape
    _, N = w.shape
    out_bytes = jnp.dtype(out_dtype).itemsize

    # Conservative working-set budget that also fits v7x's 64 MiB VMEM.
    VMEM_BUDGET = 40 << 20

    # ---- M / N tiles: large (roofline), megacore-safe --------------------
    tn = min(512, _rup(N, 128))
    tm = min(1024, _rup(M, 8))
    # v7x megacore: guarantee >= 2 blocks along a "parallel" axis by splitting
    # M when N only yields a single block.
    if pl.cdiv(N, tn) < 2 and M >= 16 and pl.cdiv(M, tm) < 2:
        tm = _rup((M + 1) // 2, 8)

    def vmem_bytes(tm_, tk_, tn_, acc):
        return (2 * (tm_ * tk_ + tk_ * tn_) * 2      # bf16 inputs, double-buffered
                + 2 * tm_ * tn_ * out_bytes          # output, double-buffered
                + (tm_ * tn_ * 4 if acc else 0)      # f32 accumulator (split-K only)
                + 2 * tn_ * 4)                       # bias

    # ---- K tile -----------------------------------------------------------
    Kp = K
    if K % 128 and _rup(K, 128) - K <= max(K // 8, 8):
        Kp = _rup(K, 128)                            # cheap lane alignment (zero pad)
    tk = Kp
    if vmem_bytes(tm, tk, tn, acc=False) > VMEM_BUDGET:
        Kp = _rup(K, 128)                            # splitting K => 128-aligned blocks
        tk = Kp
        while vmem_bytes(tm, tk, tn, acc=True) > VMEM_BUDGET and tk > 512:
            tk = _rup(tk // 2, 128)
        Kp = _rup(Kp, tk)
    split_k = Kp > tk
    while vmem_bytes(tm, tk, tn, split_k) > VMEM_BUDGET and tm > 256:
        tm = _rup(tm // 2, 8)
    while vmem_bytes(tm, tk, tn, split_k) > VMEM_BUDGET and tn > 128:
        tn = _rup(tn // 2, 128)

    # ---- zero padding (numerically free) -----------------------------------
    Mp, Np = _rup(M, tm), _rup(N, tn)
    if (Mp, Kp) != (M, K):
        a = jnp.pad(a, ((0, Mp - M), (0, Kp - K)))
    if (Kp, Np) != (K, N):
        w = jnp.pad(w, ((0, Kp - K), (0, Np - N)))
    if Np != N:
        bias = jnp.pad(bias, ((0, 0), (0, Np - N)))

    nk = Kp // tk
    out_shape = jax.ShapeDtypeStruct((Mp, Np), out_dtype)

    if nk == 1:
        out = pl.pallas_call(
            _mm_bias_kernel,
            out_shape=out_shape,
            grid_spec=pltpu.PrefetchScalarGridSpec(
                num_scalar_prefetch=0,
                grid=(Mp // tm, Np // tn),
                in_specs=[
                    pl.BlockSpec((tm, Kp), lambda i, j: (i, 0)),
                    pl.BlockSpec((Kp, tn), lambda i, j: (0, j)),
                    pl.BlockSpec((1, tn), lambda i, j: (0, j)),
                ],
                out_specs=pl.BlockSpec((tm, tn), lambda i, j: (i, j)),
            ),
            compiler_params=pltpu.CompilerParams(
                dimension_semantics=("parallel", "parallel"),
                vmem_limit_bytes=48 << 20),
        )(a, w, bias)
    else:
        out = pl.pallas_call(
            _mm_bias_acc_kernel,
            out_shape=out_shape,
            grid_spec=pltpu.PrefetchScalarGridSpec(
                num_scalar_prefetch=0,
                grid=(Mp // tm, Np // tn, nk),
                in_specs=[
                    pl.BlockSpec((tm, tk), lambda i, j, k: (i, k)),
                    pl.BlockSpec((tk, tn), lambda i, j, k: (k, j)),
                    pl.BlockSpec((1, tn), lambda i, j, k: (0, j)),
                ],
                out_specs=pl.BlockSpec((tm, tn), lambda i, j, k: (i, j)),
                scratch_shapes=[pltpu.VMEM((tm, tn), jnp.float32)],
            ),
            compiler_params=pltpu.CompilerParams(
                dimension_semantics=("parallel", "parallel", "arbitrary"),
                vmem_limit_bytes=48 << 20),
        )(a, w, bias)

    return out[:M, :N]


# ----------------------------------------------------------------------------
# down.forward: Conv2d(in_ch, out_ch, kernel_size=4, stride=2, padding=1)
#   x: NCHW f32, weight: HWIO (4,4,Cin,Cout) f32, bias: (Cout,) f32 -> NCHW f32
# ----------------------------------------------------------------------------
def down_forward(x_nchw, w_hwio, bias):
    n, cin, h, wdt = x_nchw.shape
    kh, kw, _, cout = w_hwio.shape
    assert (kh, kw) == (4, 4)
    # PyTorch output size for k=4, s=2, p=1 (supports odd H/W too).
    oh = (h - 2) // 2 + 1
    ow = (wdt - 2) // 2 + 1

    # Cast to bf16 BEFORE all layout ops: halves wrapper-side HBM traffic.
    x = jnp.transpose(x_nchw.astype(jnp.bfloat16), (0, 2, 3, 1))     # NHWC bf16
    xp = jnp.pad(x, ((0, 0), (1, 1), (1, 1), (0, 0)))                # (n, h+2, w+2, cin)

    # im2col slab with the taps merged into K, ordered (kh, kw, cin) so the
    # HWIO weight flattens to (16*cin, cout) with a plain reshape.
    patches = [xp[:, di:di + 2 * oh:2, dj:dj + 2 * ow:2, :]
               for di in range(4) for dj in range(4)]
    a = jnp.concatenate(patches, axis=-1).reshape(n * oh * ow, 16 * cin)

    wmat = w_hwio.astype(jnp.bfloat16).reshape(16 * cin, cout)
    b2d = bias.astype(jnp.float32).reshape(1, cout)

    y = _matmul_bias(a, wmat, b2d, out_dtype=jnp.float32)            # (M, cout)
    y = y.reshape(n, oh, ow, cout)
    return jnp.transpose(y, (0, 3, 1, 2))                            # NCHW


# ----------------------------------------------------------------------------
if __name__ == "__main__":
    key = jax.random.PRNGKey(0)
    kx, kwt, kb = jax.random.split(key, 3)

    N, CIN, H, W = 2, 4, 16, 16
    COUT = 128                     # lane-dense output channel count for the demo

    x = jax.random.normal(kx, (N, CIN, H, W), jnp.float32)
    w = jax.random.normal(kwt, (4, 4, CIN, COUT), jnp.float32) / float(
        (4 * 4 * CIN) ** 0.5)
    b = jax.random.normal(kb, (COUT,), jnp.float32) * 0.1

    fwd = jax.jit(down_forward)
    y = jax.block_until_ready(fwd(x, w, b))
    assert y.shape == (N, COUT, H // 2, W // 2), y.shape
    assert bool(jnp.all(jnp.isfinite(y)))

    # Reference f32 conv via lax (bf16 MXU operands => modest tolerance).
    ref = lax.conv_general_dilated(
        jnp.transpose(x, (0, 2, 3, 1)), w,
        window_strides=(2, 2), padding=((1, 1), (1, 1)),
        dimension_numbers=("NHWC", "HWIO", "NHWC")) + b
    ref = jnp.transpose(ref, (0, 3, 1, 2))
    err = float(jnp.max(jnp.abs(y - ref)))
    assert err < 0.12, err

    print("KERNEL_OK")
</pallas_src>

<mosaic_0001>
module attributes {stable_mosaic.version = 11 : i64} {
  func.func @_mm_bias_kernel(%arg0: i32, %arg1: i32, %arg2: memref<64x64xbf16, #tpu.memory_space<vmem>>, %arg3: memref<64x128xbf16, #tpu.memory_space<vmem>>, %arg4: memref<1x128xf32, #tpu.memory_space<vmem>>, %arg5: memref<64x128xf32, #tpu.memory_space<vmem>>) attributes {dimension_semantics = [#tpu.dimension_semantics<parallel>, #tpu.dimension_semantics<parallel>], iteration_bounds = array<i64: 2, 1>, scalar_prefetch = 0 : i64, scratch_operands = 0 : i64, tpu.core_type = #tpu.core_type<tc>, window_params = [{transform_indices = @transform_0, window_bounds = array<i64: 64, 64>}, {transform_indices = @transform_1, window_bounds = array<i64: 64, 128>}, {transform_indices = @transform_2, window_bounds = array<i64: 1, 128>}, {transform_indices = @transform_3, window_bounds = array<i64: 64, 128>}]} {
    %c0 = arith.constant 0 : index
    %c0_0 = arith.constant 0 : index
    %0 = vector.load %arg2[%c0, %c0_0] : memref<64x64xbf16, #tpu.memory_space<vmem>>, vector<64x64xbf16>
    %c0_1 = arith.constant 0 : index
    %c0_2 = arith.constant 0 : index
    %1 = vector.load %arg3[%c0_1, %c0_2] : memref<64x128xbf16, #tpu.memory_space<vmem>>, vector<64x128xbf16>
    %cst = arith.constant dense<0.000000e+00> : vector<64x128xf32>
    %2 = tpu.matmul %0, %1, %cst {dimension_numbers = #tpu.dot_dimension_numbers<[1], [0], [0], [1], [0, 0, 1, 1], [], []>} : vector<64x64xbf16>, vector<64x128xbf16>, vector<64x128xf32> -> vector<64x128xf32>
    %c0_3 = arith.constant 0 : index
    %c0_4 = arith.constant 0 : index
    %3 = vector.load %arg4[%c0_3, %c0_4] : memref<1x128xf32, #tpu.memory_space<vmem>>, vector<1x128xf32>
    %4 = vector.broadcast %3 : vector<1x128xf32> to vector<64x128xf32>
    %5 = arith.addf %2, %4 : vector<64x128xf32>
    %c0_5 = arith.constant 0 : index
    %c0_6 = arith.constant 0 : index
    %6 = vector.load %arg5[%c0_5, %c0_6] : memref<64x128xf32, #tpu.memory_space<vmem>>, vector<64x128xf32>
    tpu.vector_store %arg5[%c0_5, %c0_6], %5 {strides = array<i32>} : memref<64x128xf32, #tpu.memory_space<vmem>>, vector<64x128xf32>,
    return
  }
  func.func @transform_0(%arg0: i32, %arg1: i32) -> (i32, i32) {
    %c0_i32 = arith.constant 0 : i32
    %c0_i32_0 = arith.constant 0 : i32
    return %arg0, %c0_i32 : i32, i32
  }
  func.func @transform_1(%arg0: i32, %arg1: i32) -> (i32, i32) {
    %c0_i32 = arith.constant 0 : i32
    %c0_i32_0 = arith.constant 0 : i32
    return %c0_i32, %arg1 : i32, i32
  }
  func.func @transform_2(%arg0: i32, %arg1: i32) -> (i32, i32) {
    %c0_i32 = arith.constant 0 : i32
    %c0_i32_0 = arith.constant 0 : i32
    return %c0_i32, %arg1 : i32, i32
  }
  func.func @transform_3(%arg0: i32, %arg1: i32) -> (i32, i32) {
    %c0_i32 = arith.constant 0 : i32
    return %arg0, %arg1 : i32, i32
  }
}

</mosaic_0001>

<llo_original>
// kernel: down_forward.1
$region0: #{down_forward.1}
  #allocation0 [shape = 'u32[]', space=smem, size = 0x4, offset = 0x4, fixed_abs, tag = 'smem constant byte address 0x4 - core index']
  #allocation1 [shape = 'u32[144,128]{1,0:T(1,128)}', space=vmem, size = 0x12000, scoped, tag = 'internal scratch']
  %s0 = inlined_call_operand.vmem [shape: bf16[128,64], index: 0, kind: input, shape index: {}]
  %s1 = inlined_call_operand.vmem [shape: bf16[64,128], index: 1, kind: input, shape index: {}]
  %s2 = inlined_call_operand.vmem [shape: f32[1,128], index: 2, kind: input, shape index: {}]
  %s3 = inlined_call_operand.hbm [shape: f32[128,128], index: 3, kind: output, shape index: {}]
  %s4 = sld [smem:[#allocation0]]
  $region45: #{down_forward.1} parent=0
    _
  %s6 = ssub.s32 1, %s4
  %s7 = scalar_select 0, %s6, %s4
  $region1: #{down_forward.1} parent=0
    #allocation2 [shape = 'u8[65536]{0}', space=vmem, size = 0x10000, scoped, tag = 'output window, operand 0']
    #allocation3 [shape = 's32[2]{0}', space=sflag, size = 0x8, scoped, tag = 'scoped memory for down_forward.1']
    %8 = vsyncpa [#allocation3], 0
    %s9 = scalar_lea.sflag [#allocation3], 1
    %10 = vsyncpa %s9, 0
    loop: start=0, step=1, limit=4
    $region2: #{down_forward.1} parent=1 // loop_pre_header
      _
    $region3: #{down_forward.1} parent=1 // loop_header
      %s12 = sphi 0, %s16
      %p13 = scmp.ge.s32.totalorder %s12, 4
      %s19 = sphi 0, %s31
      %s20 = sphi 0, %s27
      %s21 = sphi 0, %s19
      %s22 = sphi 0, %s20
      %s23 = sphi 0, %s21
      %s24 = sphi 0, %s22
      %s34 = sphi 0, %s36
      %s37 = sphi 0, %s34
      %s38 = sphi 0, %s37
      %s54 = sphi 0, %s38
      %s60 = sphi 0, %s62
      %s63 = sphi 0, %s60
      %s64 = sphi 0, %s63
      %s80 = sphi 0, %s64
      %s86 = sphi 0, %s88
      %s89 = sphi 0, %s86
      %s90 = sphi 0, %s89
      %s106 = sphi 0, %s90
      %s114 = sphi 0, %s116
      %s117 = sphi 0, %s114
      %s118 = sphi 0, %s117
      %s134 = sphi 0, %s118
    $region4: #{down_forward.1} parent=1 // loop_header_branch
      %15 = sbr.rel (%p13) target = $region8
    $region5: #{down_forward.1} parent=1 // loop_body
      %s17 = ssub.s32 %s12, 1
      %s18 = ssub.s32 %s12, 2
      %s25 = sadd.s32 1, %s20
      %p26 = scmp.ge.s32.totalorder %s25, 1
      %s27 = scalar_select %p26, 0, %s25
      %s28 = sadd.s32 1, %s19
      %s29 = scalar_select %p26, %s28, %s19
      %p30 = scmp.ge.s32.totalorder %s29, 2
      %s31 = scalar_select %p30, 0, %s29
      %s32 = ssub.s32 %s19, %s31
      %p33 = scmp.eq.s32.totalorder %s32, 0
      %s35 = sadd.s32 %s34, 1
      %s36 = scalar_select %p33, %s34, %s35
      %p39 = pneg %p33
      %p40 = scmp.eq.s32.totalorder %s12, 1
      %p41 = por %p39, %p40
      %p42 = scmp.ne.s32.totalorder %s34, %s37
      %p43 = scmp.eq.s32.totalorder %s12, 0
      %p44 = por %p42, %p43
      %p45 = scmp.ne.s32.totalorder %s34, %s37
      %p46 = scmp.eq.s32.totalorder %s17, 1
      %p47 = por %p45, %p46
      %p48 = scmp.ne.s32.totalorder %s37, %s38
      %p49 = scmp.eq.s32.totalorder %s17, 0
      %p50 = por %p48, %p49
      %p51 = scmp.ne.s32.totalorder %s37, %s38
      %p52 = scmp.eq.s32.totalorder %s18, 1
      %p53 = por %p51, %p52
      %p55 = scmp.ne.s32.totalorder %s38, %s54
      %p56 = scmp.eq.s32.totalorder %s18, 0
      %p57 = por %p55, %p56
      %s58 = ssub.s32 %s20, %s27
      %p59 = scmp.eq.s32.totalorder %s58, 0
      %s61 = sadd.s32 %s60, 1
      %s62 = scalar_select %p59, %s60, %s61
      %p65 = pneg %p59
      %p66 = scmp.eq.s32.totalorder %s12, 1
      %p67 = por %p65, %p66
      %p68 = scmp.ne.s32.totalorder %s60, %s63
      %p69 = scmp.eq.s32.totalorder %s12, 0
      %p70 = por %p68, %p69
      %p71 = scmp.ne.s32.totalorder %s60, %s63
      %p72 = scmp.eq.s32.totalorder %s17, 1
      %p73 = por %p71, %p72
      %p74 = scmp.ne.s32.totalorder %s63, %s64
      %p75 = scmp.eq.s32.totalorder %s17, 0
      %p76 = por %p74, %p75
      %p77 = scmp.ne.s32.totalorder %s63, %s64
      %p78 = scmp.eq.s32.totalorder %s18, 1
      %p79 = por %p77, %p78
      %p81 = scmp.ne.s32.totalorder %s64, %s80
      %p82 = scmp.eq.s32.totalorder %s18, 0
      %p83 = por %p81, %p82
      %s84 = ssub.s32 %s20, %s27
      %p85 = scmp.eq.s32.totalorder %s84, 0
      %s87 = sadd.s32 %s86, 1
      %s88 = scalar_select %p85, %s86, %s87
      %p91 = pneg %p85
      %p92 = scmp.eq.s32.totalorder %s12, 1
      %p93 = por %p91, %p92
      %p94 = scmp.ne.s32.totalorder %s86, %s89
      %p95 = scmp.eq.s32.totalorder %s12, 0
      %p96 = por %p94, %p95
      %p97 = scmp.ne.s32.totalorder %s86, %s89
      %p98 = scmp.eq.s32.totalorder %s17, 1
      %p99 = por %p97, %p98
      %p100 = scmp.ne.s32.totalorder %s89, %s90
      %p101 = scmp.eq.s32.totalorder %s17, 0
      %p102 = por %p100, %p101
      %p103 = scmp.ne.s32.totalorder %s89, %s90
      %p104 = scmp.eq.s32.totalorder %s18, 1
      %p105 = por %p103, %p104
      %p107 = scmp.ne.s32.totalorder %s90, %s106
      %p108 = scmp.eq.s32.totalorder %s18, 0
      %p109 = por %p107, %p108
      %s110 = ssub.s32 %s19, %s31
      %s111 = ssub.s32 %s20, %s27
      %s112 = sor.u32 %s110, %s111
      %p113 = scmp.eq.s32.totalorder %s112, 0
      %s115 = sadd.s32 %s114, 1
      %s116 = scalar_select %p113, %s114, %s115
      %p119 = pneg %p113
      %p120 = scmp.eq.s32.totalorder %s12, 1
      %p121 = por %p119, %p120
      %p122 = scmp.ne.s32.totalorder %s114, %s117
      %p123 = scmp.eq.s32.totalorder %s12, 0
      %p124 = por %p122, %p123
      %p125 = scmp.ne.s32.totalorder %s114, %s117
      %p126 = scmp.eq.s32.totalorder %s17, 1
      %p127 = por %p125, %p126
      %p128 = scmp.ne.s32.totalorder %s117, %s118
      %p129 = scmp.eq.s32.totalorder %s17, 0
      %p130 = por %p128, %p129
      %p131 = scmp.ne.s32.totalorder %s117, %s118
      %p132 = scmp.eq.s32.totalorder %s18, 1
      %p133 = por %p131, %p132
      %p135 = scmp.ne.s32.totalorder %s118, %s134
      %p136 = scmp.eq.s32.totalorder %s18, 0
      %p137 = por %p135, %p136
      %p138 = scmp.le.s32.totalorder 1, %s12
      %p139 = scmp.lt.s32.totalorder %s12, 3
      %p140 = pnand %p138, %p139
      %p141 = pneg %p140
      // Predicated region
      $region9: #{down_forward.1} parent=5 // pred_check
        _
      $region10: #{down_forward.1} parent=5 // pred_check_branch
        %143 = sbr.rel (%p140) target = $region12
      $region11: #{down_forward.1} parent=5 // pred_region
        %s144 = ssub.s32 %s12, 1
        // Predicated region
        $region13: #{down_forward.1} parent=11 // pred_check
          %p145 = pneg %p76
        $region14: #{down_forward.1} parent=11 // pred_check_branch
          %147 = sbr.rel (%p145) target = $region16
        $region15: #{down_forward.1} parent=11 // pred_region
          %p148 = scmp.lt.s32.totalorder %s22, 0
          %s149 = scalar_select %p148, %s22, 0
          %s150 = smul.addr %s149, 4
          %s151 = scalar_lea.vmem %s1, %s150
        $region16: #{down_forward.1} parent=11 // pred_fallthru
          _
        // Predicated region
        $region17: #{down_forward.1} parent=11 // pred_check
          %p152 = pneg %p102
        $region18: #{down_forward.1} parent=11 // pred_check_branch
          %154 = sbr.rel (%p152) target = $region20
        $region19: #{down_forward.1} parent=11 // pred_region
          %p155 = scmp.lt.s32.totalorder %s22, 0
          %s156 = scalar_select %p155, %s22, 0
          %s157 = scalar_lea.vmem %s2, %s156
        $region20: #{down_forward.1} parent=11 // pred_fallthru
          _
      $region12: #{down_forward.1} parent=5 // pred_fallthru
        _
      %p158 = scmp.lt.s32.totalorder %s12, 2
      // Predicated region
      $region21: #{down_forward.1} parent=5 // pred_check
        %p159 = pneg %p158
      $region22: #{down_forward.1} parent=5 // pred_check_branch
        %161 = sbr.rel (%p159) target = $region24
      $region23: #{down_forward.1} parent=5 // pred_region
        // Predicated region
        $region25: #{down_forward.1} parent=23 // pred_check
          %p162 = pneg %p44
        $region26: #{down_forward.1} parent=23 // pred_check_branch
          %164 = sbr.rel (%p162) target = $region28
        $region27: #{down_forward.1} parent=23 // pred_region
          %s165 = smul.u32 8, %s19
          %p166 = scmp.lt.s32.totalorder %s165, 15
          %s167 = scalar_select %p166, %s165, 15
          %s168 = smul.addr %s167, 4
          %s169 = scalar_lea.vmem %s0, %s168
          %s170 = smul.u32 8, %s19
        $region28: #{down_forward.1} parent=23 // pred_fallthru
          _
      $region24: #{down_forward.1} parent=5 // pred_fallthru
        _
      %p171 = scmp.le.s32.totalorder 1, %s12
      %p172 = scmp.lt.s32.totalorder %s12, 3
      %p173 = pnand %p171, %p172
      %p174 = pneg %p173
      // Predicated region
      $region29: #{down_forward.1} parent=5 // pred_check
        _
      $region30: #{down_forward.1} parent=5 // pred_check_branch
        %176 = sbr.rel (%p173) target = $region32
      $region31: #{down_forward.1} parent=5 // pred_region
        %s177 = ssub.s32 %s12, 1
        %s178 = smul.u32 8, %s21
        %p179 = scmp.lt.s32.totalorder %s178, 15
        %s180 = scalar_select %p179, %s178, 15
        %s181 = smul.addr %s180, 4
        %s182 = scalar_lea.vmem %s0, %s181
        %p183 = pneg %p50
        %p184 = pneg %p47
        %p185 = scmp.lt.s32.totalorder %s22, 0
        %s186 = scalar_select %p185, %s22, 0
        %s187 = smul.addr %s186, 4
        %s188 = scalar_lea.vmem %s1, %s187
        %p189 = pneg %p76
        %p190 = pneg %p73
        %p191 = scmp.lt.s32.totalorder %s22, 0
        %s192 = scalar_select %p191, %s22, 0
        %s193 = scalar_lea.vmem %s2, %s192
        %p194 = pneg %p102
        %p195 = pneg %p99
        %p196 = pneg %p130
        %p197 = pneg %p127
        %s198 = sand.u32 %s117, 1
        %s199 = scalar_lea.sflag [#allocation3], %s198
        %s200 = sand.u32 %s117, 1
        %s201 = smul.addr %s200, 64
        %s202 = scalar_lea.vmem [#allocation2], %s201
        %s203 = smul.u32 8, %s21
        %p204 = scmp.lt.s32.totalorder %s203, 15
        %s205 = scalar_select %p204, %s203, 15
        %s206 = smul.addr %s205, 4
        %s207 = scalar_lea.vmem %s0, %s206
        %s208 = smul.u32 8, %s21
        %p209 = scmp.lt.s32.totalorder %s22, 0
        %s210 = scalar_select %p209, %s22, 0
        %s211 = smul.addr %s210, 4
        %s212 = scalar_lea.vmem %s1, %s211
        %p213 = scmp.lt.s32.totalorder %s22, 0
        %s214 = scalar_select %p213, %s22, 0
        %s215 = scalar_lea.vmem %s2, %s214
        %s216 = smul.u32 8, %s21
        %v218 = vld [vmem:[%s207] sm:$0xf]
        %v219 = vld [vmem:[%s207 + $0x4] sm:$0xf]
        %v220 = vld [vmem:[%s207 + $0x8] sm:$0xf]
        %v221 = vld [vmem:[%s207 + $0xc] sm:$0xf]
        %v222 = vld [vmem:[%s207 + $0x10] sm:$0xf]
        %v223 = vld [vmem:[%s207 + $0x14] sm:$0xf]
        %v224 = vld [vmem:[%s207 + $0x18] sm:$0xf]
        %v225 = vld [vmem:[%s207 + $0x1c] sm:$0xf]
        %v226 = vld [vmem:[%s212] sm:$0xf]
        %v227 = vld [vmem:[%s212 + $0x4] sm:$0xf]
        %v228 = vld [vmem:[%s212 + $0x8] sm:$0xf]
        %v229 = vld [vmem:[%s212 + $0xc] sm:$0xf]
        %v230 = vld [vmem:[%s212 + $0x10] sm:$0xf]
        %v231 = vld [vmem:[%s212 + $0x14] sm:$0xf]
        %v232 = vld [vmem:[%s212 + $0x18] sm:$0xf]
        %v233 = vld [vmem:[%s212 + $0x1c] sm:$0xf]
        %v234 = vld [vmem:[%s215] sm:$0x1]
        %v236 = vlaneseq
        %v237 = vshrl.u32 %v236, 7
        %v238 = vsub.s32 0, %v237
        %v239 = vrot.slane %v234, %v238
        %v249 = vunpack.c.l.b16 %v218
        %v250 = vunpack.c.l.b16 %v219
        %v251 = vunpack.c.l.b16 %v220
        %v252 = vunpack.c.l.b16 %v221
        %v253 = vunpack.c.l.b16 %v222
        %v254 = vunpack.c.l.b16 %v223
        %v255 = vunpack.c.l.b16 %v224
        %v256 = vunpack.c.l.b16 %v225
        %v257 = vpack.c.b16 %v250, %v249
        %v258 = vpack.c.b16 %v252, %v251
        %v259 = vpack.c.b16 %v254, %v253
        %v260 = vpack.c.b16 %v256, %v255
        %v269 = vunpack.c.l.b16 %v226
        %v270 = vunpack.c.l.b16 %v227
        %v271 = vunpack.c.l.b16 %v228
        %v272 = vunpack.c.l.b16 %v229
        %v273 = vunpack.c.l.b16 %v230
        %v274 = vunpack.c.l.b16 %v231
        %v275 = vunpack.c.l.b16 %v232
        %v276 = vunpack.c.l.b16 %v233
        %v277 = vpack.c.b16 %v270, %v269
        %v278 = vpack.c.b16 %v272, %v271
        %v279 = vpack.c.b16 %v274, %v273
        %v280 = vpack.c.b16 %v276, %v275
        %vm285 = vcmask 523264
        %v287 = vsel %vm285, %v257, 0
        %v290 = vsel %vm285, %v258, 0
        %v293 = vsel %vm285, %v259, 0
        %v296 = vsel %vm285, %v260, 0
        %298 = vmatprep.subr.bf16.mxu0 0
        %299 = vmatpush1.bf16.msra.mxu0 %v277
        %300 = vmatprep.subr.bf16.mxu0 0
        %301 = vmatpush1.bf16.msra.mxu0 %v278
        %302 = vmatprep.subr.bf16.mxu0 0
        %303 = vmatpush1.bf16.msra.mxu0 %v279
        %304 = vmatprep.subr.bf16.mxu0 0
        %305 = vmatpush1.bf16.msra.mxu0 %v280
        %306 = vmatprep.subr.bf16.mxu0 0
        %307 = vmatpush1.bf16.msra.mxu0 0
        %308 = vmatprep.subr.bf16.mxu0 0
        %309 = vmatpush1.bf16.msra.mxu0 0
        %310 = vmatprep.subr.bf16.mxu0 0
        %311 = vmatpush1.bf16.msra.mxu0 0
        %312 = vmatprep.subr.bf16.mxu0 0
        %313 = vmatpush1.bf16.msra.mxu0 0
        %314 = vmatprep.subr.bf16.mxu0 0
        %315 = vmatpush1.bf16.msra.mxu0 0
        %316 = vmatprep.subr.bf16.mxu0 0
        %317 = vmatpush1.bf16.msra.mxu0 0
        %318 = vmatprep.subr.bf16.mxu0 0
        %319 = vmatpush1.bf16.msra.mxu0 0
        %320 = vmatprep.subr.bf16.mxu0 0
        %321 = vmatpush1.bf16.msra.mxu0 0
        %322 = vmatprep.subr.bf16.mxu0 0
        %323 = vmatpush1.bf16.msra.mxu0 0
        %324 = vmatprep.subr.bf16.mxu0 0
        %325 = vmatpush1.bf16.msra.mxu0 0
        %326 = vmatprep.subr.bf16.mxu0 0
        %327 = vmatpush1.bf16.msra.mxu0 0
        %328 = vmatprep.subr.bf16.mxu0 0
        %329 = vmatpush1.bf16.msra.mxu0 0
        %330 = vmatprep.mubr.bf16.mxu0 0
        %331 = vmatmul.mubr.bf16.gmra.mrb[0].mxu0 %v287
        %v332 = vpop.f32.mrb[0].mxu0
        %v333 = vadd.f32 %v239, %v332
        %v334 = vpop.f32.mrb[0].mxu0
        %v335 = vpop.f32.mrb[0].mxu0
        %v336 = vadd.f32 %v239, %v335
        %v337 = vpop.f32.mrb[0].mxu0
        %338 = vmatprep.mubr.bf16.mxu0 0
        %339 = vmatmul.mubr.bf16.gmra.mrb[0].mxu0 %v290
        %v340 = vpop.f32.mrb[0].mxu0
        %v341 = vadd.f32 %v239, %v340
        %v342 = vpop.f32.mrb[0].mxu0
        %v343 = vpop.f32.mrb[0].mxu0
        %v344 = vadd.f32 %v239, %v343
        %v345 = vpop.f32.mrb[0].mxu0
        %346 = vmatprep.mubr.bf16.mxu0 0
        %347 = vmatmul.mubr.bf16.gmra.mrb[0].mxu0 %v293
        %v348 = vpop.f32.mrb[0].mxu0
        %v349 = vadd.f32 %v239, %v348
        %v350 = vpop.f32.mrb[0].mxu0
        %v351 = vpop.f32.mrb[0].mxu0
        %v352 = vadd.f32 %v239, %v351
        %v353 = vpop.f32.mrb[0].mxu0
        %354 = vmatprep.mubr.bf16.mxu0 0
        %355 = vmatmul.mubr.bf16.gmra.mrb[0].mxu0 %v296
        %v356 = vpop.f32.mrb[0].mxu0
        %v357 = vadd.f32 %v239, %v356
        %v358 = vpop.f32.mrb[0].mxu0
        %v359 = vpop.f32.mrb[0].mxu0
        %v360 = vadd.f32 %v239, %v359
        %v361 = vpop.f32.mrb[0].mxu0
        %362 = vdwg.mxu0
        %363 = vst [vmem:[%s202] sm:$0xff] %v333
        %364 = vst [vmem:[%s202 + $0x8] sm:$0xff] %v336
        %365 = vst [vmem:[%s202 + $0x10] sm:$0xff] %v341
        %366 = vst [vmem:[%s202 + $0x18] sm:$0xff] %v344
        %367 = vst [vmem:[%s202 + $0x20] sm:$0xff] %v349
        %368 = vst [vmem:[%s202 + $0x28] sm:$0xff] %v352
        %369 = vst [vmem:[%s202 + $0x30] sm:$0xff] %v357
        %370 = vst [vmem:[%s202 + $0x38] sm:$0xff] %v360
        %s371 = sand.u32 %s117, 1
        %s372 = scalar_lea.sflag [#allocation3], %s371
        %s373 = sand.u32 %s117, 1
        %s374 = smul.addr %s373, 64
        %s375 = scalar_lea.vmem [#allocation2], %s374
        // Predicated region
        $region33: #{down_forward.1} parent=31 // pred_check
          %p376 = pneg %p127
        $region34: #{down_forward.1} parent=31 // pred_check_branch
          %378 = sbr.rel (%p376) target = $region36
        $region35: #{down_forward.1} parent=31 // pred_region
          %s379 = smul.u32 8, %s21
          %s381 = ssub.s32 1024, 1024
          %382 = vsyncadd %s372, %s381
          %s383 = sadd.s32 %s22, %s379
          %s384 = smul.addr %s383, 128
          %s385 = scalar_lea.hbm %s3, %s384
          %s386 = sshll.u32 %s375, 4
          %s387 = int_to_ptr.vmem [resolvable:$true] %s386
          %392 = dma.vmem_to_hbm [thread:$0]  %s387, 1024, %s385, %s372, 128, 128, 8
        $region36: #{down_forward.1} parent=31 // pred_fallthru
          _
      $region32: #{down_forward.1} parent=5 // pred_fallthru
        _
      %p393 = scmp.le.s32.totalorder 2, %s12
      // Predicated region
      $region37: #{down_forward.1} parent=5 // pred_check
        %p394 = pneg %p393
      $region38: #{down_forward.1} parent=5 // pred_check_branch
        %396 = sbr.rel (%p394) target = $region40
      $region39: #{down_forward.1} parent=5 // pred_region
        %s397 = ssub.s32 %s12, 2
        // Predicated region
        $region41: #{down_forward.1} parent=39 // pred_check
          %p398 = pneg %p133
        $region42: #{down_forward.1} parent=39 // pred_check_branch
          %400 = sbr.rel (%p398) target = $region44
        $region43: #{down_forward.1} parent=39 // pred_region
          %s401 = sand.u32 %s118, 1
          %s402 = scalar_lea.sflag [#allocation3], %s401
          %s403 = sand.u32 %s118, 1
          %s404 = smul.addr %s403, 64
          %s405 = scalar_lea.vmem [#allocation2], %s404
          %406 = dma.done %s402, 1024
        $region44: #{down_forward.1} parent=39 // pred_fallthru
          _
      $region40: #{down_forward.1} parent=5 // pred_fallthru
        _
    $region6: #{down_forward.1} parent=1 // loop_footer
      %s16 = sadd.s32 1, %s12
    $region7: #{down_forward.1} parent=1 // loop_footer_branch
      %11 = sbr.rel target = $region3
    $region8: #{down_forward.1} parent=1 // loop_exit
      _
    %407 = vsyncpa [#allocation3], 1
    %s408 = scalar_lea.sflag [#allocation3], 1
    %409 = vsyncpa %s408, 1

</llo_original>
